<compile_context>
chip_gen: v7x
topology: tpu7x:2x2x1
jax: 0.10.0
libtpu: 0.0.40
codegen_flags: <defaults>
</compile_context>

<pallas_src>
import jax
import jax.numpy as jnp
from jax.experimental import pallas as pl
from jax.experimental.pallas import tpu as pltpu

HIDDEN = 64
BN_EPS = 1e-5
LEAKY_SLOPE = 0.01  # torch.nn.LeakyReLU default negative_slope


def _mlp_kernel(x_ref, w1_ref, b1_ref, w2_ref, b2_ref, o_ref):
    # x_ref : (TILE_B, D)        w1_ref: (D, 64)   b1_ref: (1, 64)
    # w2_ref: (1, 64)            b2_ref: (1, 1)    o_ref : (1, TILE_B)  (lane-dense)
    x = x_ref[...]

    # Linear(input_dim, 64) with BatchNorm already folded into w1/b1 (f32 acc on MXU).
    h = jnp.dot(x, w1_ref[...], preferred_element_type=jnp.float32)   # (TILE_B, 64)
    h = h + b1_ref[...]

    # LeakyReLU (2 VPU ops).
    h = jnp.maximum(h, LEAKY_SLOPE * h)

    # Dropout(p=0.35): identity in eval mode.
    # TODO(synk): training-mode dropout (PRNG mask + 1/(1-p) scaling) intentionally omitted.

    # Linear(64, 1) computed directly into the lane-dense (1, TILE_B) output layout:
    #   y[0, b] = sum_d w2[0, d] * h[b, d]
    # i.e. a dot_general contracting the hidden dim of both operands (MXU),
    # which also performs the "batch -> lanes" relayout for free.
    y = jax.lax.dot_general(
        w2_ref[...], h, (((1,), (1,)), ((), ())),
        preferred_element_type=jnp.float32)                           # (1, TILE_B)
    o_ref[...] = (y + b2_ref[...]).astype(o_ref.dtype)


def _x_buffer_budget_bytes():
    """Per-x-buffer VMEM budget, chosen per TPU generation (conservative default)."""
    try:
        kind = jax.devices()[0].device_kind.lower()
    except Exception:
        return 6 << 20
    if "v5 lite" in kind or "v5e" in kind:
        return 4 << 20        # smaller default scoped VMEM; still ~8K rows at D=32
    if "v6" in kind:
        return 8 << 20        # 128 MiB physical VMEM -> go bigger
    return 6 << 20            # v7x (64 MiB physical per TC) and unknown parts


def _pick_tile_b(B, D, itemsize, budget_bytes):
    """Pick a batch-tile size.

    - VMEM row footprint is lane-padded to a multiple of 128 lanes.
    - tile_b is a multiple of 128 so the lane-dense (1, tile_b) output block is
      a legal block shape (and bf16 (16,128) packing is respected).
    - For small/medium batches, prefer >= 2 grid steps (when a 128-aligned
      split exists) so ("parallel",) can use both TensorCores on v7x.
    """
    padded_row_bytes = max(-(-D // 128) * 128, 128) * itemsize
    tile = budget_bytes // padded_row_bytes
    tile = max(128, min(int(tile), 32768))
    tile = (tile // 128) * 128
    if tile >= B:
        half = -(-B // 2)                  # ceil(B / 2)
        half = -(-half // 128) * 128       # round up to a lane multiple
        if half < B:
            return half                    # 2 grid steps (second one partial)
        return B                           # single full-array block (tiny batches)
    return tile


def neural_net_forward(x, params, *, tile_b=None):
    """x: [B, D] float32 (or bfloat16) -> [B] float32 (matches .squeeze(1))."""
    B, D = x.shape
    w1, b1, gamma, beta, rmean, rvar, w2, b2 = params

    # ---- Fold BatchNorm1d (eval mode, running stats) into the first Linear ----
    scale = gamma * jax.lax.rsqrt(rvar + BN_EPS)                    # (1, 64)
    w1f = (w1 * scale).astype(jnp.float32)                          # (D, 64)
    b1f = ((b1 - rmean) * scale + beta).astype(jnp.float32)         # (1, 64)
    w2row = w2.reshape(1, HIDDEN).astype(jnp.float32)               # (1, 64)
    b2f = b2.reshape(1, 1).astype(jnp.float32)                      # (1, 1)

    # bf16 x only if the caller already supplies bf16 (no extra HBM cast pass here).
    if x.dtype == jnp.bfloat16:
        xin = x
        w1f = w1f.astype(jnp.bfloat16)
        itemsize = 2
    else:
        xin = x if x.dtype == jnp.float32 else x.astype(jnp.float32)
        itemsize = 4

    if tile_b is None:
        tile_b = _pick_tile_b(B, D, itemsize, _x_buffer_budget_bytes())
    else:
        tile_b = min(int(tile_b), B)
        if tile_b != B:
            tile_b = max(128, (tile_b // 128) * 128)   # keep output block legal
            if tile_b >= B:
                tile_b = B

    grid = (pl.cdiv(B, tile_b),)

    out = pl.pallas_call(
        _mlp_kernel,
        out_shape=jax.ShapeDtypeStruct((1, B), jnp.float32),
        grid_spec=pltpu.PrefetchScalarGridSpec(
            num_scalar_prefetch=0,
            grid=grid,
            in_specs=[
                pl.BlockSpec((tile_b, D), lambda i: (i, 0)),     # x: tiled over batch
                pl.BlockSpec((D, HIDDEN), lambda i: (0, 0)),     # w1' (BN folded), resident
                pl.BlockSpec((1, HIDDEN), lambda i: (0, 0)),     # b1' (BN folded), resident
                pl.BlockSpec((1, HIDDEN), lambda i: (0, 0)),     # w2 as a row, resident
                pl.BlockSpec((1, 1), lambda i: (0, 0)),          # b2, resident
            ],
            # Lane-dense output: one (1, tile_b) row per grid step.
            out_specs=pl.BlockSpec((1, tile_b), lambda i: (0, i)),
        ),
        compiler_params=pltpu.CompilerParams(
            # Batch tiles are independent -> shard across TensorCores (v7x megacore).
            dimension_semantics=("parallel",),
            # Explicit scoped-VMEM limit: safe on v5e/v6e (128 MiB physical) and
            # v7x (64 MiB physical); needed on v5e where the default is 16 MiB.
            vmem_limit_bytes=48 << 20,
        ),
    )(xin, w1f, b1f, w2row, b2f)
    return out.reshape(B)   # (1, B) -> (B,)  == squeeze(1)


def init_params(key, input_dim):
    """Parameter shapes mirroring the PyTorch module (BN stats made non-trivial
    so the BN-fold path is actually exercised)."""
    k1, k2, k3, k4, k5, k6, k7, k8 = jax.random.split(key, 8)
    bound1 = 1.0 / jnp.sqrt(jnp.float32(input_dim))
    bound2 = 1.0 / jnp.sqrt(jnp.float32(HIDDEN))
    w1 = jax.random.uniform(k1, (input_dim, HIDDEN), jnp.float32, -bound1, bound1)
    b1 = jax.random.uniform(k2, (1, HIDDEN), jnp.float32, -bound1, bound1)
    w2 = jax.random.uniform(k3, (HIDDEN, 1), jnp.float32, -bound2, bound2)
    b2 = jax.random.uniform(k4, (1, 1), jnp.float32, -bound2, bound2)
    gamma = 1.0 + 0.1 * jax.random.normal(k5, (1, HIDDEN), jnp.float32)
    beta = 0.1 * jax.random.normal(k6, (1, HIDDEN), jnp.float32)
    rmean = 0.1 * jax.random.normal(k7, (1, HIDDEN), jnp.float32)
    rvar = 1.0 + jax.random.uniform(k8, (1, HIDDEN), jnp.float32, 0.0, 0.5)
    return (w1, b1, gamma, beta, rmean, rvar, w2, b2)


def reference_forward(x, params):
    """Pure-JAX reference (unfused BN, plain matmuls) for correctness checking."""
    w1, b1, gamma, beta, rmean, rvar, w2, b2 = params
    h = x @ w1 + b1
    h = (h - rmean) * jax.lax.rsqrt(rvar + BN_EPS) * gamma + beta
    h = jnp.where(h >= 0.0, h, LEAKY_SLOPE * h)
    y = h @ w2 + b2
    return jnp.squeeze(y, axis=1)


if __name__ == "__main__":
    key = jax.random.PRNGKey(0)
    kx, kx2, kp = jax.random.split(key, 3)

    INPUT_DIM = 32
    params = init_params(kp, INPUT_DIM)

    # --- small-shape smoke test (single full-array block) ---
    B = 8
    x = jax.random.normal(kx, (B, INPUT_DIM), jnp.float32)
    out = jax.block_until_ready(neural_net_forward(x, params))
    ref = reference_forward(x, params)
    assert out.shape == (B,), out.shape
    assert jnp.allclose(out, ref, atol=1e-4, rtol=1e-4)

    # --- multi-tile, default tiling: 128-aligned 2-step grid + partial last block ---
    B2 = 520
    x2 = jax.random.normal(kx2, (B2, INPUT_DIM), jnp.float32)
    out2 = jax.block_until_ready(neural_net_forward(x2, params))
    ref2 = reference_forward(x2, params)
    assert out2.shape == (B2,), out2.shape
    assert jnp.allclose(out2, ref2, atol=1e-4, rtol=1e-4)

    # --- explicit tile override (3 grid steps, lane-dense output blocks) ---
    out3 = jax.block_until_ready(neural_net_forward(x2, params, tile_b=256))
    assert out3.shape == (B2,)
    assert jnp.allclose(out3, ref2, atol=1e-4, rtol=1e-4)

    # --- bf16 path: only when the caller already supplies bf16 x ---
    out_bf = jax.block_until_ready(neural_net_forward(x2.astype(jnp.bfloat16), params))
    assert out_bf.shape == (B2,)
    assert bool(jnp.all(jnp.isfinite(out_bf)))
    assert jnp.allclose(out_bf, ref2, atol=1e-1, rtol=1e-1)

    print("KERNEL_OK")
</pallas_src>

<mosaic_0001>
module attributes {stable_mosaic.version = 11 : i64} {
  func.func @_mlp_kernel(%arg0: i32, %arg1: memref<8x32xf32, #tpu.memory_space<vmem>>, %arg2: memref<32x64xf32, #tpu.memory_space<vmem>>, %arg3: memref<1x64xf32, #tpu.memory_space<vmem>>, %arg4: memref<1x64xf32, #tpu.memory_space<vmem>>, %arg5: memref<1x1xf32, #tpu.memory_space<vmem>>, %arg6: memref<1x8xf32, #tpu.memory_space<vmem>>) attributes {dimension_semantics = [#tpu.dimension_semantics<parallel>], iteration_bounds = array<i64: 1>, scalar_prefetch = 0 : i64, scratch_operands = 0 : i64, tpu.core_type = #tpu.core_type<tc>, window_params = [{transform_indices = @transform_0, window_bounds = array<i64: 8, 32>}, {pipeline_mode = #tpu.pipeline_mode<synchronous>, transform_indices = @transform_1, window_bounds = array<i64: 32, 64>}, {pipeline_mode = #tpu.pipeline_mode<synchronous>, transform_indices = @transform_2, window_bounds = array<i64: 1, 64>}, {pipeline_mode = #tpu.pipeline_mode<synchronous>, transform_indices = @transform_3, window_bounds = array<i64: 1, 64>}, {pipeline_mode = #tpu.pipeline_mode<synchronous>, transform_indices = @transform_4, window_bounds = array<i64: 1, 1>}, {transform_indices = @transform_5, window_bounds = array<i64: 1, 8>}]} {
    %c0 = arith.constant 0 : index
    %c0_0 = arith.constant 0 : index
    %0 = vector.load %arg1[%c0, %c0_0] : memref<8x32xf32, #tpu.memory_space<vmem>>, vector<8x32xf32>
    %c0_1 = arith.constant 0 : index
    %c0_2 = arith.constant 0 : index
    %1 = vector.load %arg2[%c0_1, %c0_2] : memref<32x64xf32, #tpu.memory_space<vmem>>, vector<32x64xf32>
    %cst = arith.constant dense<0.000000e+00> : vector<8x64xf32>
    %2 = tpu.matmul %0, %1, %cst {dimension_numbers = #tpu.dot_dimension_numbers<[1], [0], [0], [1], [0, 0, 1, 1], [], []>} : vector<8x32xf32>, vector<32x64xf32>, vector<8x64xf32> -> vector<8x64xf32>
    %c0_3 = arith.constant 0 : index
    %c0_4 = arith.constant 0 : index
    %3 = vector.load %arg3[%c0_3, %c0_4] : memref<1x64xf32, #tpu.memory_space<vmem>>, vector<1x64xf32>
    %4 = vector.broadcast %3 : vector<1x64xf32> to vector<8x64xf32>
    %5 = arith.addf %2, %4 : vector<8x64xf32>
    %cst_5 = arith.constant 0.00999999977 : f32
    %6 = vector.broadcast %cst_5 : f32 to vector<8x64xf32>
    %7 = arith.mulf %6, %5 : vector<8x64xf32>
    %8 = arith.maximumf %5, %7 : vector<8x64xf32>
    %c0_6 = arith.constant 0 : index
    %c0_7 = arith.constant 0 : index
    %9 = vector.load %arg4[%c0_6, %c0_7] : memref<1x64xf32, #tpu.memory_space<vmem>>, vector<1x64xf32>
    %cst_8 = arith.constant dense<0.000000e+00> : vector<1x8xf32>
    %10 = tpu.matmul %9, %8, %cst_8 {dimension_numbers = #tpu.dot_dimension_numbers<[1], [1], [0], [0], [0, 0, 1, 0], [], []>} : vector<1x64xf32>, vector<8x64xf32>, vector<1x8xf32> -> vector<1x8xf32>
    %c0_9 = arith.constant 0 : index
    %c0_10 = arith.constant 0 : index
    %11 = vector.load %arg5[%c0_9, %c0_10] : memref<1x1xf32, #tpu.memory_space<vmem>>, vector<1x1xf32>
    %12 = vector.broadcast %11 : vector<1x1xf32> to vector<1x8xf32>
    %13 = arith.addf %10, %12 : vector<1x8xf32>
    %c0_11 = arith.constant 0 : index
    %c0_12 = arith.constant 0 : index
    %14 = vector.load %arg6[%c0_11, %c0_12] : memref<1x8xf32, #tpu.memory_space<vmem>>, vector<1x8xf32>
    tpu.vector_store %arg6[%c0_11, %c0_12], %13 {strides = array<i32>} : memref<1x8xf32, #tpu.memory_space<vmem>>, vector<1x8xf32>,
    return
  }
  func.func @transform_0(%arg0: i32) -> (i32, i32) {
    %c0_i32 = arith.constant 0 : i32
    %c0_i32_0 = arith.constant 0 : i32
    return %arg0, %c0_i32 : i32, i32
  }
  func.func @transform_1(%arg0: i32) -> (i32, i32) {
    %c0_i32 = arith.constant 0 : i32
    %c0_i32_0 = arith.constant 0 : i32
    %c0_i32_1 = arith.constant 0 : i32
    return %c0_i32, %c0_i32_0 : i32, i32
  }
  func.func @transform_2(%arg0: i32) -> (i32, i32) {
    %c0_i32 = arith.constant 0 : i32
    %c0_i32_0 = arith.constant 0 : i32
    %c0_i32_1 = arith.constant 0 : i32
    return %c0_i32, %c0_i32_0 : i32, i32
  }
  func.func @transform_3(%arg0: i32) -> (i32, i32) {
    %c0_i32 = arith.constant 0 : i32
    %c0_i32_0 = arith.constant 0 : i32
    %c0_i32_1 = arith.constant 0 : i32
    return %c0_i32, %c0_i32_0 : i32, i32
  }
  func.func @transform_4(%arg0: i32) -> (i32, i32) {
    %c0_i32 = arith.constant 0 : i32
    %c0_i32_0 = arith.constant 0 : i32
    %c0_i32_1 = arith.constant 0 : i32
    return %c0_i32, %c0_i32_0 : i32, i32
  }
  func.func @transform_5(%arg0: i32) -> (i32, i32) {
    %c0_i32 = arith.constant 0 : i32
    %c0_i32_0 = arith.constant 0 : i32
    return %c0_i32, %arg0 : i32, i32
  }
}

</mosaic_0001>

<llo_original>
// kernel: tpu_custom_call.1
$region0: #{tpu_custom_call.1}
  #allocation0 [shape = 'u32[]', space=smem, size = 0x4, offset = 0x4, fixed_abs, tag = 'smem constant byte address 0x4 - core index']
  #allocation1 [shape = 'u32[144,128]{1,0:T(1,128)}', space=vmem, size = 0x12000, scoped, tag = 'internal scratch']
  #allocation2 [shape = 'f32[1,1]{1,0:T(1,128)S(1)}', space=vmem, size = 0x200, scoped, tag = 'scoped memory for tpu_custom_call.1']
  %s0 = inlined_call_operand.hbm [shape: f32[8,32], index: 0, kind: input, shape index: {}]
  %s1 = inlined_call_operand.hbm [shape: f32[32,64], index: 1, kind: input, shape index: {}]
  %s2 = inlined_call_operand.vmem [shape: f32[1,64], index: 2, kind: input, shape index: {}]
  %s3 = inlined_call_operand.vmem [shape: f32[1,64], index: 3, kind: input, shape index: {}]
  %s4 = inlined_call_operand.<no memory space> [shape: f32[1,1], index: 4, kind: input, shape index: {}]
  %s5 = inlined_call_operand.hbm [shape: f32[1,8], index: 5, kind: output, shape index: {}]
  %s6 = sld [smem:[#allocation0]]
  $region38: #{tpu_custom_call.1} parent=0
    _
  %s8 = ssub.s32 1, %s6
  %s9 = scalar_select 0, %s8, %s6
  %v10 = vstv %s4
  %11 = vst [vmem:[#allocation2] sm:$0x1] %v10
  $region1: #{tpu_custom_call.1} parent=0
    #allocation3 [shape = 'u8[4096]{0}', space=vmem, size = 0x1000, scoped, tag = 'input window, operand 0, single buffered']
    #allocation4 [shape = 's32[1]{0}', space=sflag, size = 0x4, scoped, tag = 'scoped memory for tpu_custom_call.1']
    #allocation5 [shape = 's32[1]{0}', space=sflag, size = 0x4, scoped, tag = 'scoped memory for tpu_custom_call.1']
    #allocation6 [shape = 'u8[16384]{0}', space=vmem, size = 0x4000, scoped, tag = 'input window, operand 1, single buffered']
    #allocation7 [shape = 's32[1]{0}', space=sflag, size = 0x4, scoped, tag = 'scoped memory for tpu_custom_call.1']
    #allocation8 [shape = 'u8[512]{0}', space=vmem, size = 0x400, scoped, tag = 'output window, operand 0, single buffered']
    %12 = vsyncpa [#allocation4], 0
    %13 = vsyncpa [#allocation7], 0
    %14 = vsyncpa [#allocation5], 0
    // Predicated region
    $region2: #{tpu_custom_call.1} parent=1 // pred_check
      _
    $region3: #{tpu_custom_call.1} parent=1 // pred_check_branch
      %16 = sbr.rel (0) target = $region5
    $region4: #{tpu_custom_call.1} parent=1 // pred_region
      %s18 = ssub.s32 128, 128
      %19 = vsyncadd [#allocation4], %s18
      %s21 = sshll.u32 [#allocation3], 4
      %s22 = int_to_ptr.vmem [resolvable:$true] %s21
      %24 = dma.hbm_to_vmem [thread:$0]  %s0, 128, %s22, [#allocation4]
    $region5: #{tpu_custom_call.1} parent=1 // pred_fallthru
      _
    // Predicated region
    $region6: #{tpu_custom_call.1} parent=1 // pred_check
      _
    $region7: #{tpu_custom_call.1} parent=1 // pred_check_branch
      %26 = sbr.rel (0) target = $region9
    $region8: #{tpu_custom_call.1} parent=1 // pred_region
      %s28 = ssub.s32 512, 512
      %29 = vsyncadd [#allocation7], %s28
      %s30 = sshll.u32 [#allocation6], 4
      %s31 = int_to_ptr.vmem [resolvable:$true] %s30
      %36 = dma.hbm_to_vmem [thread:$0]  %s1, 512, %s31, [#allocation7], 128, 128, 8
    $region9: #{tpu_custom_call.1} parent=1 // pred_fallthru
      _
    // Predicated region
    $region10: #{tpu_custom_call.1} parent=1 // pred_check
      _
    $region11: #{tpu_custom_call.1} parent=1 // pred_check_branch
      %38 = sbr.rel (0) target = $region13
    $region12: #{tpu_custom_call.1} parent=1 // pred_region
      _
    $region13: #{tpu_custom_call.1} parent=1 // pred_fallthru
      _
    // Predicated region
    $region14: #{tpu_custom_call.1} parent=1 // pred_check
      _
    $region15: #{tpu_custom_call.1} parent=1 // pred_check_branch
      %40 = sbr.rel (0) target = $region17
    $region16: #{tpu_custom_call.1} parent=1 // pred_region
      _
    $region17: #{tpu_custom_call.1} parent=1 // pred_fallthru
      _
    // Predicated region
    $region18: #{tpu_custom_call.1} parent=1 // pred_check
      _
    $region19: #{tpu_custom_call.1} parent=1 // pred_check_branch
      %42 = sbr.rel (0) target = $region21
    $region20: #{tpu_custom_call.1} parent=1 // pred_region
      _
    $region21: #{tpu_custom_call.1} parent=1 // pred_fallthru
      _
    // Predicated region
    $region22: #{tpu_custom_call.1} parent=1 // pred_check
      _
    $region23: #{tpu_custom_call.1} parent=1 // pred_check_branch
      %44 = sbr.rel (0) target = $region25
    $region24: #{tpu_custom_call.1} parent=1 // pred_region
      %45 = dma.done [#allocation4], 128
    $region25: #{tpu_custom_call.1} parent=1 // pred_fallthru
      _
    // Predicated region
    $region26: #{tpu_custom_call.1} parent=1 // pred_check
      _
    $region27: #{tpu_custom_call.1} parent=1 // pred_check_branch
      %47 = sbr.rel (0) target = $region29
    $region28: #{tpu_custom_call.1} parent=1 // pred_region
      %48 = dma.done [#allocation7], 512
    $region29: #{tpu_custom_call.1} parent=1 // pred_fallthru
      _
    %v49 = vld [vmem:[#allocation3] sm:$0xff]
    %v50 = vld [vmem:[#allocation6] sm:$0xff]
    %v51 = vld [vmem:[#allocation6 + $0x8] sm:$0xff]
    %v52 = vld [vmem:[#allocation6 + $0x10] sm:$0xff]
    %v53 = vld [vmem:[#allocation6 + $0x18] sm:$0xff]
    %v54 = vld [vmem:[%s2] sm:$0x1]
    %v56 = vlaneseq
    %v57 = vshrl.u32 %v56, 7
    %v58 = vsub.s32 0, %v57
    %v59 = vrot.slane %v54, %v58
    %vm61 = vcmask 261120
    %v63 = vsel %vm61, %v49, 0
    %65 = vmatprep.subr.mxu0 0.0
    %66 = vmatpush1.msra.mxu0 %v50
    %67 = vmatprep.subr.mxu0 0.0
    %68 = vmatpush1.msra.mxu0 %v51
    %69 = vmatprep.subr.mxu0 0.0
    %70 = vmatpush1.msra.mxu0 %v52
    %71 = vmatprep.subr.mxu0 0.0
    %72 = vmatpush1.msra.mxu0 %v53
    %73 = vmatprep.subr.mxu0 0.0
    %74 = vmatpush1.msra.mxu0 0.0
    %75 = vmatprep.subr.mxu0 0.0
    %76 = vmatpush1.msra.mxu0 0.0
    %77 = vmatprep.subr.mxu0 0.0
    %78 = vmatpush1.msra.mxu0 0.0
    %79 = vmatprep.subr.mxu0 0.0
    %80 = vmatpush1.msra.mxu0 0.0
    %81 = vmatprep.subr.mxu0 0.0
    %82 = vmatpush1.msra.mxu0 0.0
    %83 = vmatprep.subr.mxu0 0.0
    %84 = vmatpush1.msra.mxu0 0.0
    %85 = vmatprep.subr.mxu0 0.0
    %86 = vmatpush1.msra.mxu0 0.0
    %87 = vmatprep.subr.mxu0 0.0
    %88 = vmatpush1.msra.mxu0 0.0
    %89 = vmatprep.subr.mxu0 0.0
    %90 = vmatpush1.msra.mxu0 0.0
    %91 = vmatprep.subr.mxu0 0.0
    %92 = vmatpush1.msra.mxu0 0.0
    %93 = vmatprep.subr.mxu0 0.0
    %94 = vmatpush1.msra.mxu0 0.0
    %95 = vmatprep.subr.mxu0 0.0
    %96 = vmatpush1.msra.mxu0 0.0
    %97 = vmatprep.subr.mxu0 0.0
    %98 = vmatpush1.msra.mxu0 0.0
    %99 = vmatprep.subr.mxu0 0.0
    %100 = vmatpush1.msra.mxu0 0.0
    %101 = vmatprep.subr.mxu0 0.0
    %102 = vmatpush1.msra.mxu0 0.0
    %103 = vmatprep.subr.mxu0 0.0
    %104 = vmatpush1.msra.mxu0 0.0
    %105 = vmatprep.subr.mxu0 0.0
    %106 = vmatpush1.msra.mxu0 0.0
    %107 = vmatprep.subr.mxu0 0.0
    %108 = vmatpush1.msra.mxu0 0.0
    %109 = vmatprep.subr.mxu0 0.0
    %110 = vmatpush1.msra.mxu0 0.0
    %111 = vmatprep.subr.mxu0 0.0
    %112 = vmatpush1.msra.mxu0 0.0
    %113 = vmatprep.subr.mxu0 0.0
    %114 = vmatpush1.msra.mxu0 0.0
    %115 = vmatprep.subr.mxu0 0.0
    %116 = vmatpush1.msra.mxu0 0.0
    %117 = vmatprep.subr.mxu0 0.0
    %118 = vmatpush1.msra.mxu0 0.0
    %119 = vmatprep.subr.mxu0 0.0
    %120 = vmatpush1.msra.mxu0 0.0
    %121 = vmatprep.subr.mxu0 0.0
    %122 = vmatpush1.msra.mxu0 0.0
    %123 = vmatprep.subr.mxu0 0.0
    %124 = vmatpush1.msra.mxu0 0.0
    %125 = vmatprep.subr.mxu0 0.0
    %126 = vmatpush1.msra.mxu0 0.0
    %127 = vmatprep.subr.mxu0 0.0
    %128 = vmatpush1.msra.mxu0 0.0
    %129 = vmatprep.mubr.f32.mxu0 0.0
    %130 = vmatmul.mubr.f32.gmra.mrb[0].mxu0 %v63
    %v131 = vpop.f32.mrb[0].mxu0
    %v132 = vadd.f32 %v59, %v131
    %v133 = vpop.f32.mrb[0].mxu0
    %134 = vdwg.mxu0
    %v135 = vmul.f32 %v132, 0.01
    %v136 = vmax.f32 %v132, %v135
    %v137 = vld [vmem:[%s3] sm:$0x1]
    %v138 = vld [vmem:[#allocation2] sm:$0x1]
    %140 = vset.pattern.permute.xlu0 0
    %141 = vperm.xlu0 %140, %v138
    %v142 = vpop.permute.xlu0 %141
    %v144 = vlaneseq
    %v145 = vshrl.u32 %v144, 7
    %v146 = vsub.s32 0, %v145
    %v147 = vrot.slane %v142, %v146
    %vm148 = vcmask 523264
    %v150 = vsel %vm148, %v137, 0
    %v153 = vsel %vm148, %v136, 0
    %155 = vmatprep.subr.mxu0 0.0
    %156 = vmatpush1.xpose.msra.mxu0 %v153
    %157 = vmatprep.subr.mxu0 0.0
    %158 = vmatpush1.xpose.msra.mxu0 0.0
    %159 = vmatprep.subr.mxu0 0.0
    %160 = vmatpush1.xpose.msra.mxu0 0.0
    %161 = vmatprep.subr.mxu0 0.0
    %162 = vmatpush1.xpose.msra.mxu0 0.0
    %163 = vmatprep.subr.mxu0 0.0
    %164 = vmatpush1.xpose.msra.mxu0 0.0
    %165 = vmatprep.subr.mxu0 0.0
    %166 = vmatpush1.xpose.msra.mxu0 0.0
    %167 = vmatprep.subr.mxu0 0.0
    %168 = vmatpush1.xpose.msra.mxu0 0.0
    %169 = vmatprep.subr.mxu0 0.0
    %170 = vmatpush1.xpose.msra.mxu0 0.0
    %171 = vmatprep.subr.mxu0 0.0
    %172 = vmatpush1.xpose.msra.mxu0 0.0
    %173 = vmatprep.subr.mxu0 0.0
    %174 = vmatpush1.xpose.msra.mxu0 0.0
    %175 = vmatprep.subr.mxu0 0.0
    %176 = vmatpush1.xpose.msra.mxu0 0.0
    %177 = vmatprep.subr.mxu0 0.0
    %178 = vmatpush1.xpose.msra.mxu0 0.0
    %179 = vmatprep.subr.mxu0 0.0
    %180 = vmatpush1.xpose.msra.mxu0 0.0
    %181 = vmatprep.subr.mxu0 0.0
    %182 = vmatpush1.xpose.msra.mxu0 0.0
    %183 = vmatprep.subr.mxu0 0.0
    %184 = vmatpush1.xpose.msra.mxu0 0.0
    %185 = vmatprep.subr.mxu0 0.0
    %186 = vmatpush1.xpose.msra.mxu0 0.0
    %187 = vmatprep.subr.mxu0 0.0
    %188 = vmatpush1.xpose.msra.mxu0 0.0
    %189 = vmatprep.subr.mxu0 0.0
    %190 = vmatpush1.xpose.msra.mxu0 0.0
    %191 = vmatprep.subr.mxu0 0.0
    %192 = vmatpush1.xpose.msra.mxu0 0.0
    %193 = vmatprep.subr.mxu0 0.0
    %194 = vmatpush1.xpose.msra.mxu0 0.0
    %195 = vmatprep.subr.mxu0 0.0
    %196 = vmatpush1.xpose.msra.mxu0 0.0
    %197 = vmatprep.subr.mxu0 0.0
    %198 = vmatpush1.xpose.msra.mxu0 0.0
    %199 = vmatprep.subr.mxu0 0.0
    %200 = vmatpush1.xpose.msra.mxu0 0.0
    %201 = vmatprep.subr.mxu0 0.0
    %202 = vmatpush1.xpose.msra.mxu0 0.0
    %203 = vmatprep.subr.mxu0 0.0
    %204 = vmatpush1.xpose.msra.mxu0 0.0
    %205 = vmatprep.subr.mxu0 0.0
    %206 = vmatpush1.xpose.msra.mxu0 0.0
    %207 = vmatprep.subr.mxu0 0.0
    %208 = vmatpush1.xpose.msra.mxu0 0.0
    %209 = vmatprep.subr.mxu0 0.0
    %210 = vmatpush1.xpose.msra.mxu0 0.0
    %211 = vmatprep.subr.mxu0 0.0
    %212 = vmatpush1.xpose.msra.mxu0 0.0
    %213 = vmatprep.subr.mxu0 0.0
    %214 = vmatpush1.xpose.msra.mxu0 0.0
    %215 = vmatprep.subr.mxu0 0.0
    %216 = vmatpush1.xpose.msra.mxu0 0.0
    %217 = vmatprep.subr.mxu0 0.0
    %218 = vmatpush1.xpose.msra.mxu0 0.0
    %219 = vmatprep.mubr.f32.mxu0 0.0
    %220 = vmatmul.mubr.f32.gmra.mrb[0].mxu0 %v150
    %v221 = vpop.f32.mrb[0].mxu0
    %v222 = vadd.f32 %v147, %v221
    %v223 = vpop.f32.mrb[0].mxu0
    %224 = vdwg.mxu0
    %vm225 = vcmask 57344
    %226 = vst.msk [vmem:[#allocation8] sm:$0x1] %vm225, %v222
    // Predicated region
    $region30: #{tpu_custom_call.1} parent=1 // pred_check
      _
    $region31: #{tpu_custom_call.1} parent=1 // pred_check_branch
      %228 = sbr.rel (0) target = $region33
    $region32: #{tpu_custom_call.1} parent=1 // pred_region
      %s230 = ssub.s32 16, 16
      %231 = vsyncadd [#allocation5], %s230
      %s233 = sshll.u32 [#allocation8], 4
      %s234 = int_to_ptr.vmem [resolvable:$true] %s233
      %236 = dma.vmem_to_hbm [thread:$0]  %s234, 16, %s5, [#allocation5]
    $region33: #{tpu_custom_call.1} parent=1 // pred_fallthru
      _
    // Predicated region
    $region34: #{tpu_custom_call.1} parent=1 // pred_check
      _
    $region35: #{tpu_custom_call.1} parent=1 // pred_check_branch
      %238 = sbr.rel (0) target = $region37
    $region36: #{tpu_custom_call.1} parent=1 // pred_region
      %239 = dma.done [#allocation5], 16
    $region37: #{tpu_custom_call.1} parent=1 // pred_fallthru
      _
    %240 = vsyncpa [#allocation4], 1
    %241 = vsyncpa [#allocation7], 1
    %242 = vsyncpa [#allocation5], 1

</llo_original>
